<compile_context>
chip_gen: v5e
topology: v5e:2x2
jax: 0.10.0
libtpu: 0.0.40
codegen_flags: <defaults>
</compile_context>

<pallas_src>
import jax
import jax.numpy as jnp
from jax.experimental import pallas as pl
from jax.experimental.pallas import tpu as pltpu

IN_FEATURES = 10
OUT_FEATURES = 3

_TILE_B = 4096        # batch tile for the gridded path
_XLA_BYPASS_B = 256   # below this, skip Pallas and let XLA fuse the tiny matmul


def linear_kernel(x_ref, w_ref, b_ref, o_ref):
    """VPU-only Linear(10, 3).

    x_ref: (tb, 10) f32 VMEM  -- batch tile, features on lanes
    w_ref: (3, 10)  f32 VMEM  -- PyTorch weight layout; row n is output n
    b_ref: (1, 3)   f32 SMEM  -- bias scalars
    o_ref: (tb, 3)  f32 VMEM
    """
    x = x_ref[...]
    cols = []
    for n in range(OUT_FEATURES):
        # (tb,10) * (1,10): sublane-broadcast multiply (VALU);
        # sum over the 10 feature lanes: cross-lane reduce (XLU);
        # + SMEM scalar bias: scalar-broadcast add (VALU). No MXU anywhere.
        yn = jnp.sum(x * w_ref[n:n + 1, :], axis=1, keepdims=True) + b_ref[0, n]
        cols.append(yn)
    o_ref[...] = jnp.concatenate(cols, axis=1).astype(o_ref.dtype)


def prepare_params(weight, bias):
    """One-time parameter formatting (hoisted out of the per-call wrapper)."""
    w = jnp.asarray(weight, dtype=jnp.float32)
    if w.shape == (OUT_FEATURES, IN_FEATURES):
        pass                                  # PyTorch nn.Linear.weight (out, in)
    elif w.shape == (IN_FEATURES, OUT_FEATURES):
        w = w.T                               # explicit transpose, never a reshape
    else:
        raise ValueError(
            f"weight must be ({OUT_FEATURES},{IN_FEATURES}) or "
            f"({IN_FEATURES},{OUT_FEATURES}), got {w.shape}")
    b = jnp.asarray(bias, dtype=jnp.float32)
    if b.shape != (OUT_FEATURES,):
        raise ValueError(f"bias must have shape ({OUT_FEATURES},), got {b.shape}")
    return w, b.reshape(1, OUT_FEATURES)


def _cost(batch):
    return pl.CostEstimate(
        flops=2 * batch * IN_FEATURES * OUT_FEATURES,
        transcendentals=0,
        bytes_accessed=4 * (batch * IN_FEATURES
                            + IN_FEATURES * OUT_FEATURES
                            + OUT_FEATURES
                            + batch * OUT_FEATURES),
    )


def _linear_pallas_whole(x2d, w, b2d):
    """B < _TILE_B: single invocation, no grid, no pipelining machinery."""
    batch = x2d.shape[0]
    vmem = pl.BlockSpec(memory_space=pltpu.MemorySpace.VMEM)
    smem = pl.BlockSpec(memory_space=pltpu.MemorySpace.SMEM)
    return pl.pallas_call(
        linear_kernel,
        out_shape=jax.ShapeDtypeStruct((batch, OUT_FEATURES), jnp.float32),
        in_specs=[vmem, vmem, smem],
        out_specs=vmem,
        cost_estimate=_cost(batch),
    )(x2d, w, b2d)


def _linear_pallas_tiled(x2d, w, b2d):
    """Large B: tile only over the batch axis; weight/bias stay resident."""
    batch = x2d.shape[0]
    grid = (pl.cdiv(batch, _TILE_B),)
    return pl.pallas_call(
        linear_kernel,
        out_shape=jax.ShapeDtypeStruct((batch, OUT_FEATURES), jnp.float32),
        grid=grid,
        in_specs=[
            pl.BlockSpec((_TILE_B, IN_FEATURES), lambda i: (i, 0)),
            pl.BlockSpec((OUT_FEATURES, IN_FEATURES), lambda i: (0, 0)),
            pl.BlockSpec(memory_space=pltpu.MemorySpace.SMEM),  # bias scalars
        ],
        out_specs=pl.BlockSpec((_TILE_B, OUT_FEATURES), lambda i: (i, 0)),
        compiler_params=pltpu.CompilerParams(
            dimension_semantics=("parallel",)),
        cost_estimate=_cost(batch),
    )(x2d, w, b2d)


def test_neural_network_forward(x, w, b2d, *, force_pallas=False):
    """Forward pass of TestNeuralNetwork.

    x:   (B, ...) whose trailing dims flatten to 10.
    w:   (3, 10) f32 weight from prepare_params() (PyTorch layout).
    b2d: (1, 3) f32 bias from prepare_params().
    """
    batch = x.shape[0]
    x2d = x.reshape(batch, -1)                       # nn.Flatten(start_dim=1)
    if x2d.shape[1] != IN_FEATURES:
        raise ValueError(
            f"trailing dims of x must flatten to {IN_FEATURES}, got {x2d.shape[1]}")
    if x2d.dtype != jnp.float32:
        x2d = x2d.astype(jnp.float32)

    if not force_pallas and batch < _XLA_BYPASS_B:
        # Custom-call boundary (launch + DMA setup) costs more than the op here.
        return x2d @ w.T + b2d
    if batch >= _TILE_B:
        return _linear_pallas_tiled(x2d, w, b2d)
    return _linear_pallas_whole(x2d, w, b2d)


if __name__ == "__main__":
    key = jax.random.PRNGKey(0)
    kx, kw, kb, kx2, kx3 = jax.random.split(key, 5)

    # Deterministic synthetic parameters (PyTorch-style uniform bound 1/sqrt(10)).
    bound = 1.0 / jnp.sqrt(float(IN_FEATURES))
    weight_pt = jax.random.uniform(kw, (OUT_FEATURES, IN_FEATURES),
                                   minval=-bound, maxval=bound, dtype=jnp.float32)
    bias = jax.random.uniform(kb, (OUT_FEATURES,),
                              minval=-bound, maxval=bound, dtype=jnp.float32)
    w, b2d = prepare_params(weight_pt, bias)   # hoisted, done once

    def ref_forward(xx):
        return xx.reshape(xx.shape[0], -1) @ w.T + b2d

    # 1) Small batch, forced through the no-grid Pallas path (batch=2, 2x5 -> 10).
    x = jax.random.normal(kx, (2, 2, 5), dtype=jnp.float32)
    out_small = test_neural_network_forward(x, w, b2d, force_pallas=True)
    jax.block_until_ready(out_small)
    assert out_small.shape == (2, OUT_FEATURES)
    assert jnp.allclose(out_small, ref_forward(x), atol=1e-5), "small Pallas path mismatch"

    # 1b) Same input through the auto path (XLA bypass at tiny B).
    out_auto = test_neural_network_forward(x, w, b2d)
    jax.block_until_ready(out_auto)
    assert jnp.allclose(out_auto, ref_forward(x), atol=1e-5), "XLA bypass mismatch"

    # 2) Large batch: gridded, batch-parallel path (2 full tiles).
    xb = jax.random.normal(kx2, (2 * _TILE_B, 2, 5), dtype=jnp.float32)
    out_big = test_neural_network_forward(xb, w, b2d)
    jax.block_until_ready(out_big)
    assert out_big.shape == (2 * _TILE_B, OUT_FEATURES)
    assert jnp.allclose(out_big, ref_forward(xb), atol=1e-4), "tiled path mismatch"

    # 3) Ragged batch: partial final tile (masked writeback of the valid rows).
    xr = jax.random.normal(kx3, (_TILE_B + 513, 2, 5), dtype=jnp.float32)
    out_rag = test_neural_network_forward(xr, w, b2d)
    jax.block_until_ready(out_rag)
    assert out_rag.shape == (_TILE_B + 513, OUT_FEATURES)
    assert jnp.allclose(out_rag, ref_forward(xr), atol=1e-4), "ragged tile mismatch"

    print("KERNEL_OK")
</pallas_src>

<mosaic_0001>
module attributes {stable_mosaic.version = 11 : i64} {
  func.func @linear_kernel(%arg0: memref<2x10xf32, #tpu.memory_space<vmem>>, %arg1: memref<3x10xf32, #tpu.memory_space<vmem>>, %arg2: memref<1x3xf32, #tpu.memory_space<smem>>, %arg3: memref<2x3xf32, #tpu.memory_space<vmem>>) attributes {dimension_semantics = [], scalar_prefetch = 0 : i64, scratch_operands = 0 : i64, tpu.core_type = #tpu.core_type<tc>} {
    %c0 = arith.constant 0 : index
    %c0_0 = arith.constant 0 : index
    %0 = vector.load %arg0[%c0, %c0_0] : memref<2x10xf32, #tpu.memory_space<vmem>>, vector<2x10xf32>
    %c0_1 = arith.constant 0 : index
    %c0_2 = arith.constant 0 : index
    %1 = vector.load %arg1[%c0_1, %c0_2] : memref<3x10xf32, #tpu.memory_space<vmem>>, vector<1x10xf32>
    %2 = vector.broadcast %1 : vector<1x10xf32> to vector<2x10xf32>
    %3 = arith.mulf %0, %2 : vector<2x10xf32>
    %cst = arith.constant dense<0.000000e+00> : vector<2xf32>
    %4 = vector.multi_reduction <add>, %3, %cst [1] : vector<2x10xf32> to vector<2xf32>
    %5 = vector.shape_cast %4 : vector<2xf32> to vector<2x1xf32>
    %c0_3 = arith.constant 0 : index
    %c0_4 = arith.constant 0 : index
    %6 = memref.load %arg2[%c0_3, %c0_4] : memref<1x3xf32, #tpu.memory_space<smem>>
    %7 = vector.broadcast %6 : f32 to vector<2x1xf32>
    %8 = arith.addf %5, %7 : vector<2x1xf32>
    %c1 = arith.constant 1 : index
    %c0_5 = arith.constant 0 : index
    %9 = vector.load %arg1[%c1, %c0_5] : memref<3x10xf32, #tpu.memory_space<vmem>>, vector<1x10xf32>
    %10 = vector.broadcast %9 : vector<1x10xf32> to vector<2x10xf32>
    %11 = arith.mulf %0, %10 : vector<2x10xf32>
    %cst_6 = arith.constant dense<0.000000e+00> : vector<2xf32>
    %12 = vector.multi_reduction <add>, %11, %cst_6 [1] : vector<2x10xf32> to vector<2xf32>
    %13 = vector.shape_cast %12 : vector<2xf32> to vector<2x1xf32>
    %c0_7 = arith.constant 0 : index
    %c1_8 = arith.constant 1 : index
    %14 = memref.load %arg2[%c0_7, %c1_8] : memref<1x3xf32, #tpu.memory_space<smem>>
    %15 = vector.broadcast %14 : f32 to vector<2x1xf32>
    %16 = arith.addf %13, %15 : vector<2x1xf32>
    %c2 = arith.constant 2 : index
    %c0_9 = arith.constant 0 : index
    %17 = vector.load %arg1[%c2, %c0_9] : memref<3x10xf32, #tpu.memory_space<vmem>>, vector<1x10xf32>
    %18 = vector.broadcast %17 : vector<1x10xf32> to vector<2x10xf32>
    %19 = arith.mulf %0, %18 : vector<2x10xf32>
    %cst_10 = arith.constant dense<0.000000e+00> : vector<2xf32>
    %20 = vector.multi_reduction <add>, %19, %cst_10 [1] : vector<2x10xf32> to vector<2xf32>
    %21 = vector.shape_cast %20 : vector<2xf32> to vector<2x1xf32>
    %c0_11 = arith.constant 0 : index
    %c2_12 = arith.constant 2 : index
    %22 = memref.load %arg2[%c0_11, %c2_12] : memref<1x3xf32, #tpu.memory_space<smem>>
    %23 = vector.broadcast %22 : f32 to vector<2x1xf32>
    %24 = arith.addf %21, %23 : vector<2x1xf32>
    %25 = tpu.concatenate %8, %16, %24 in 1 : vector<2x1xf32>, vector<2x1xf32>, vector<2x1xf32> -> vector<2x3xf32>
    %c0_13 = arith.constant 0 : index
    %c0_14 = arith.constant 0 : index
    %26 = vector.load %arg3[%c0_13, %c0_14] : memref<2x3xf32, #tpu.memory_space<vmem>>, vector<2x3xf32>
    tpu.vector_store %arg3[%c0_13, %c0_14], %25 {strides = array<i32>} : memref<2x3xf32, #tpu.memory_space<vmem>>, vector<2x3xf32>,
    return
  }
}

</mosaic_0001>

<llo_original>
// kernel: tpu_custom_call.1
$region0: #{tpu_custom_call.1}
  #allocation0 [shape = 'u32[]', space=smem, size = 0x4, offset = 0x4, fixed_abs, tag = 'smem constant byte address 0x4 - core index']
  #allocation1 [shape = 'u32[72,128]{1,0:T(1,128)}', space=vmem, size = 0x9000, scoped, tag = 'internal scratch']
  %s0 = inlined_call_operand.hbm [shape: f32[2,10], index: 0, kind: input, shape index: {}]
  %s1 = inlined_call_operand.hbm [shape: f32[3,10], index: 1, kind: input, shape index: {}]
  %s2 = inlined_call_operand.vmem [shape: f32[1,3], index: 2, kind: input, shape index: {}]
  %s3 = inlined_call_operand.hbm [shape: f32[2,3], index: 3, kind: output, shape index: {}]
  %s4 = sld [smem:[#allocation0]]
  $region34: #{tpu_custom_call.1} parent=0
    _
  %s6 = ssub.s32 1, %s4
  %s7 = scalar_select 0, %s6, %s4
  $region1: #{tpu_custom_call.1} parent=0
    #allocation2 [shape = 'u8[1024]{0}', space=vmem, size = 0x400, scoped, tag = 'input window, operand 0, single buffered']
    #allocation3 [shape = 's32[1]{0}', space=sflag, size = 0x4, scoped, tag = 'scoped memory for tpu_custom_call.1']
    #allocation4 [shape = 's32[1]{0}', space=sflag, size = 0x4, scoped, tag = 'scoped memory for tpu_custom_call.1']
    #allocation5 [shape = 's32[1]{0}', space=sflag, size = 0x4, scoped, tag = 'scoped memory for tpu_custom_call.1']
    #allocation6 [shape = 'u8[2048]{0}', space=vmem, size = 0x800, scoped, tag = 'input window, operand 1, single buffered']
    #allocation7 [shape = 's32[1]{0}', space=sflag, size = 0x4, scoped, tag = 'scoped memory for tpu_custom_call.1']
    #allocation8 [shape = 'u8[512]{0}', space=smem, size = 0x200, scoped, tag = 'input window, operand 2, single buffered']
    #allocation9 [shape = 'u8[1024]{0}', space=vmem, size = 0x400, scoped, tag = 'output window, operand 0, single buffered']
    %8 = vsyncpa [#allocation3], 0
    %9 = vsyncpa [#allocation7], 0
    %10 = vsyncpa [#allocation5], 0
    %11 = vsyncpa [#allocation4], 0
    // Predicated region
    $region2: #{tpu_custom_call.1} parent=1 // pred_check
      _
    $region3: #{tpu_custom_call.1} parent=1 // pred_check_branch
      %13 = sbr.rel (0) target = $region5
    $region4: #{tpu_custom_call.1} parent=1 // pred_region
      %15 = vsyncadd [#allocation3], 0
      %s17 = sshll.u32 %s0, 4
      %s18 = int_to_ptr.hbm [resolvable:$true] %s17
      %s19 = sshll.u32 [#allocation2], 4
      %s20 = int_to_ptr.vmem [resolvable:$true] %s19
      %22 = dma.hbm_to_vmem [thread:$0]  %s18, 32, %s20, [#allocation3]
    $region5: #{tpu_custom_call.1} parent=1 // pred_fallthru
      _
    // Predicated region
    $region6: #{tpu_custom_call.1} parent=1 // pred_check
      _
    $region7: #{tpu_custom_call.1} parent=1 // pred_check_branch
      %24 = sbr.rel (0) target = $region9
    $region8: #{tpu_custom_call.1} parent=1 // pred_region
      %26 = vsyncadd [#allocation7], 0
      %s28 = sshll.u32 %s1, 4
      %s29 = int_to_ptr.hbm [resolvable:$true] %s28
      %s30 = sshll.u32 [#allocation6], 4
      %s31 = int_to_ptr.vmem [resolvable:$true] %s30
      %33 = dma.hbm_to_vmem [thread:$0]  %s29, 64, %s31, [#allocation7]
    $region9: #{tpu_custom_call.1} parent=1 // pred_fallthru
      _
    // Predicated region
    $region10: #{tpu_custom_call.1} parent=1 // pred_check
      _
    $region11: #{tpu_custom_call.1} parent=1 // pred_check_branch
      %35 = sbr.rel (0) target = $region13
    $region12: #{tpu_custom_call.1} parent=1 // pred_region
      %37 = vsyncadd [#allocation5], 0
      %s39 = sshll.u32 %s2, 4
      %s40 = int_to_ptr.vmem [resolvable:$true] %s39
      %42 = dma.vmem_to_smem %s40, 16, [#allocation8], [#allocation5]
    $region13: #{tpu_custom_call.1} parent=1 // pred_fallthru
      _
    // Predicated region
    $region14: #{tpu_custom_call.1} parent=1 // pred_check
      _
    $region15: #{tpu_custom_call.1} parent=1 // pred_check_branch
      %44 = sbr.rel (0) target = $region17
    $region16: #{tpu_custom_call.1} parent=1 // pred_region
      %46 = dma.done [#allocation3], 32
    $region17: #{tpu_custom_call.1} parent=1 // pred_fallthru
      _
    // Predicated region
    $region18: #{tpu_custom_call.1} parent=1 // pred_check
      _
    $region19: #{tpu_custom_call.1} parent=1 // pred_check_branch
      %48 = sbr.rel (0) target = $region21
    $region20: #{tpu_custom_call.1} parent=1 // pred_region
      %50 = dma.done [#allocation7], 64
    $region21: #{tpu_custom_call.1} parent=1 // pred_fallthru
      _
    // Predicated region
    $region22: #{tpu_custom_call.1} parent=1 // pred_check
      _
    $region23: #{tpu_custom_call.1} parent=1 // pred_check_branch
      %52 = sbr.rel (0) target = $region25
    $region24: #{tpu_custom_call.1} parent=1 // pred_region
      %54 = dma.done [#allocation5], 16
    $region25: #{tpu_custom_call.1} parent=1 // pred_fallthru
      _
    %55 = sfence
    %v56 = vld [vmem:[#allocation2] sm:$0x3]
    %v57 = vld [vmem:[#allocation6] sm:$0x1]
    %v58 = vperm.slane %v57, 0
    %v59 = vmul.f32 %v56, %v58
    %vm60 = vcmask 74752
    %v61 = vsel %vm60, %v59, 0.0
    %62 = vadd.xlane.f32.xlu0 %v61
    %v63 = vpop.xlane.xlu0 %62
    %s64 = sld [smem:[#allocation8]]
    %v65 = vstv %s64
    %v66 = vadd.f32 %v63, %v65
    %v67 = vld [vmem:[#allocation6 + $0x1] sm:$0x1]
    %v68 = vperm.slane %v67, 0
    %v69 = vmul.f32 %v56, %v68
    %v70 = vsel %vm60, %v69, 0.0
    %71 = vadd.xlane.f32.xlu0 %v70
    %v72 = vpop.xlane.xlu0 %71
    %s73 = sld [smem:[#allocation8 + $0x1]]
    %v74 = vstv %s73
    %v75 = vadd.f32 %v72, %v74
    %v76 = vld [vmem:[#allocation6 + $0x2] sm:$0x1]
    %v77 = vperm.slane %v76, 0
    %v78 = vmul.f32 %v56, %v77
    %v79 = vsel %vm60, %v78, 0.0
    %80 = vadd.xlane.f32.xlu0 %v79
    %v81 = vpop.xlane.xlu0 %80
    %s82 = sld [smem:[#allocation8 + $0x2]]
    %v83 = vstv %s82
    %v84 = vadd.f32 %v81, %v83
    %vm85 = vcmask 7168
    %v86 = vsel %vm85, %v66, %v75
    %vm87 = vcmask 15360
    %v88 = vsel %vm87, %v86, %v84
    %vm89 = vcmask 17408
    %90 = vst.msk [vmem:[#allocation9] sm:$0x3] %vm89, %v88
    // Predicated region
    $region26: #{tpu_custom_call.1} parent=1 // pred_check
      _
    $region27: #{tpu_custom_call.1} parent=1 // pred_check_branch
      %92 = sbr.rel (0) target = $region29
    $region28: #{tpu_custom_call.1} parent=1 // pred_region
      %94 = vsyncadd [#allocation4], 0
      %s96 = sshll.u32 [#allocation9], 4
      %s97 = int_to_ptr.vmem [resolvable:$true] %s96
      %s98 = sshll.u32 %s3, 4
      %s99 = int_to_ptr.hbm [resolvable:$true] %s98
      %101 = dma.vmem_to_hbm [thread:$0]  %s97, 32, %s99, [#allocation4]
    $region29: #{tpu_custom_call.1} parent=1 // pred_fallthru
      _
    // Predicated region
    $region30: #{tpu_custom_call.1} parent=1 // pred_check
      _
    $region31: #{tpu_custom_call.1} parent=1 // pred_check_branch
      %103 = sbr.rel (0) target = $region33
    $region32: #{tpu_custom_call.1} parent=1 // pred_region
      %105 = dma.done [#allocation4], 32
    $region33: #{tpu_custom_call.1} parent=1 // pred_fallthru
      _
    %106 = vsyncpa [#allocation3], 1
    %107 = vsyncpa [#allocation7], 1
    %108 = vsyncpa [#allocation4], 1
    %109 = vsyncpa [#allocation5], 1

</llo_original>
